<compile_context>
chip_gen: v7x
topology: tpu7x:2x2x1
jax: 0.10.0
libtpu: 0.0.40
codegen_flags: <defaults>
</compile_context>

<pallas_src>
import math
import functools

import jax
import jax.numpy as jnp
from jax.experimental import pallas as pl
from jax.experimental.pallas import tpu as pltpu


def _pos_embed_kernel(scale_ref, phase_ref, out_ref, *, N):
    """Writes one (rows_tile, W, Cpad) tile of the batch-invariant embedding.

    scale_ref : (1, 1, Cpad) f32
        c <  N : norm_y / dim_t[c]        (y-half scale, normalize fused)
        N<=c<2N: norm_x / dim_t[c - N]    (x-half scale)
        c >= 2N: 0                        (lane padding)
    phase_ref : (1, 1, Cpad) f32 -- 0 for even feature index (sin), pi/2 for odd
        (cos(v) == sin(v + pi/2); exact because dim_t[2k] == dim_t[2k+1]).
    out_ref   : (rows_tile, W, Cpad)
    """
    rows_tile, W, Cpad = out_ref.shape
    i = pl.program_id(0)

    scale = scale_ref[...]                                   # (1, 1, Cpad)
    phase = phase_ref[...]                                   # (1, 1, Cpad)

    # y_embed = global_row + 1, x_embed = col + 1 (cumsum of the all-ones mask).
    row_ids = jax.lax.broadcasted_iota(jnp.int32, (rows_tile, 1, Cpad), 0)
    y = (row_ids + (i * rows_tile + 1)).astype(jnp.float32)  # (rows_tile,1,Cpad)
    col_ids = jax.lax.broadcasted_iota(jnp.int32, (1, W, Cpad), 1)
    x = (col_ids + 1).astype(jnp.float32)                    # (1, W, Cpad)

    # Separable sin tables: (rows_tile + W) * Cpad sins per tile instead of
    # rows_tile * W * Cpad.
    y_tab = jnp.sin(y * scale + phase)                       # (rows_tile,1,Cpad)
    x_tab = jnp.sin(x * scale + phase)                       # (1, W, Cpad)

    # Channel c < N takes the y table, c >= N the x table (padded lanes -> 0).
    c_ids = jax.lax.broadcasted_iota(jnp.int32, (rows_tile, W, Cpad), 2)
    out_ref[...] = jnp.where(
        c_ids < N,
        jnp.broadcast_to(y_tab, (rows_tile, W, Cpad)),
        jnp.broadcast_to(x_tab, (rows_tile, W, Cpad)),
    ).astype(out_ref.dtype)


def _pick_rows_tile(H, W, Cpad, elem_bytes, cap_bytes=2 * 1024 * 1024,
                    max_rows=256):
    """Divisor of H: block <= cap_bytes, <= max_rows rows, grid >= 2 if possible."""
    bytes_per_row = max(1, W * Cpad * elem_bytes)
    limit = max(1, min(max_rows, cap_bytes // bytes_per_row))
    best = 1
    for d in range(1, min(H, limit) + 1):
        if H % d == 0:
            best = d
    # v7x megacore: prefer at least 2 grid steps when H allows it.
    if best == H and H > 1:
        for d in range(H // 2, 0, -1):
            if H % d == 0:
                best = d
                break
    return best


def position_embedding_sine(bs, hw_size, num_pos_feats=64, temperature=10000,
                            normalize=False, scale=None, dtype=jnp.float32):
    if scale is not None and normalize is False:
        raise ValueError("normalize should be True if scale is passed")
    if scale is None:
        scale = 2 * math.pi
    if num_pos_feats % 2 != 0:
        raise ValueError("num_pos_feats must be even")

    N = num_pos_feats
    C = 2 * N
    Cpad = ((C + 127) // 128) * 128      # lane-dense output (no-op for C=128)
    H = W = hw_size
    eps = 1e-6

    # Host-side per-channel constants (two tiny resident (1, 1, Cpad) blocks).
    f = jnp.arange(N, dtype=jnp.float32)
    inv_dim_t = jnp.asarray(float(temperature), jnp.float32) ** (
        -2.0 * jnp.floor(f / 2.0) / N)
    y_fac = (float(scale) / (float(H) + eps)) if normalize else 1.0
    x_fac = (float(scale) / (float(W) + eps)) if normalize else 1.0
    scale_row = jnp.concatenate([inv_dim_t * y_fac, inv_dim_t * x_fac])
    phase_half = jnp.where((jnp.arange(N) % 2) == 0, 0.0,
                           math.pi / 2.0).astype(jnp.float32)
    phase_row = jnp.concatenate([phase_half, phase_half])
    if Cpad != C:
        pad = jnp.zeros((Cpad - C,), jnp.float32)
        scale_row = jnp.concatenate([scale_row, pad])
        phase_row = jnp.concatenate([phase_row, pad])
    scale_arr = scale_row.reshape(1, 1, Cpad).astype(jnp.float32)
    phase_arr = phase_row.reshape(1, 1, Cpad).astype(jnp.float32)

    elem_bytes = jnp.dtype(dtype).itemsize
    rows_tile = _pick_rows_tile(H, W, Cpad, elem_bytes)
    grid = (H // rows_tile,)

    # Only raise the scoped-VMEM limit when a single H-row is already large
    # (huge W); stays within v7x's 64 MiB physical VMEM.
    block_bytes = rows_tile * W * Cpad * elem_bytes
    cp_kwargs = dict(dimension_semantics=("parallel",))
    if 2 * block_bytes > 16 * 1024 * 1024:
        cp_kwargs["vmem_limit_bytes"] = int(
            min(64 * 1024 * 1024, 2 * block_bytes + (4 << 20)))

    kernel = functools.partial(_pos_embed_kernel, N=N)

    pos = pl.pallas_call(
        kernel,
        out_shape=jax.ShapeDtypeStruct((H, W, Cpad), dtype),
        grid=grid,
        in_specs=[pl.BlockSpec((1, 1, Cpad), lambda i: (0, 0, 0)),
                  pl.BlockSpec((1, 1, Cpad), lambda i: (0, 0, 0))],
        out_specs=pl.BlockSpec((rows_tile, W, Cpad), lambda i: (i, 0, 0)),
        compiler_params=pltpu.CompilerParams(**cp_kwargs),
    )(scale_arr, phase_arr)

    pos = pos.reshape(H * W, Cpad)
    if Cpad != C:
        pos = pos[:, :C]
    # Batch-invariant: downstream code should prefer consuming `pos` (HW, C)
    # directly and letting the bs broadcast fuse into the consumer; it is
    # materialized here only to match the PyTorch forward's (bs, HW, C) output.
    return jnp.broadcast_to(pos[None, :, :], (bs, H * W, C))


def _reference(bs, hw_size, num_pos_feats=64, temperature=10000,
               normalize=False, scale=None):
    """Pure-JAX re-implementation of the PyTorch forward for verification."""
    if scale is None:
        scale = 2 * math.pi
    H = W = hw_size
    not_mask = jnp.ones((bs, H, W), jnp.float32)
    y_embed = jnp.cumsum(not_mask, axis=1)
    x_embed = jnp.cumsum(not_mask, axis=2)
    if normalize:
        eps = 1e-6
        y_embed = y_embed / (y_embed[:, -1:, :] + eps) * scale
        x_embed = x_embed / (x_embed[:, :, -1:] + eps) * scale
    f = jnp.arange(num_pos_feats, dtype=jnp.float32)
    dim_t = jnp.asarray(float(temperature), jnp.float32) ** (
        2.0 * jnp.floor(f / 2.0) / num_pos_feats)
    pos_x = x_embed[..., None] / dim_t
    pos_y = y_embed[..., None] / dim_t
    pos_x = jnp.stack((jnp.sin(pos_x[..., 0::2]), jnp.cos(pos_x[..., 1::2])), axis=4)
    pos_x = pos_x.reshape(bs, H, W, num_pos_feats)
    pos_y = jnp.stack((jnp.sin(pos_y[..., 0::2]), jnp.cos(pos_y[..., 1::2])), axis=4)
    pos_y = pos_y.reshape(bs, H, W, num_pos_feats)
    pos = jnp.concatenate((pos_y, pos_x), axis=3).reshape(bs, H * W, 2 * num_pos_feats)
    return pos


if __name__ == "__main__":
    # The module's forward takes only scalars (bs, hw_size); no tensor inputs.
    _ = jax.random.PRNGKey(0)  # deterministic seed (unused: forward has no array inputs)

    bs, hw_size, num_pos_feats = 2, 16, 64

    # normalize=False path
    out = position_embedding_sine(bs, hw_size, num_pos_feats=num_pos_feats)
    out = jax.block_until_ready(out)
    ref = _reference(bs, hw_size, num_pos_feats=num_pos_feats)
    assert out.shape == (bs, hw_size * hw_size, 2 * num_pos_feats), out.shape
    assert out.dtype == jnp.float32
    assert jnp.allclose(out, ref, atol=1e-5, rtol=1e-5), float(jnp.max(jnp.abs(out - ref)))

    # normalize=True path (fused scale/(H+eps) factors + phase-fold + separable tables)
    out_n = position_embedding_sine(bs, hw_size, num_pos_feats=num_pos_feats,
                                    normalize=True)
    out_n = jax.block_until_ready(out_n)
    ref_n = _reference(bs, hw_size, num_pos_feats=num_pos_feats, normalize=True)
    assert jnp.allclose(out_n, ref_n, atol=1e-5, rtol=1e-5), float(jnp.max(jnp.abs(out_n - ref_n)))

    print("KERNEL_OK")
</pallas_src>

<mosaic_0001>
module attributes {stable_mosaic.version = 11 : i64} {
  func.func @_pos_embed_kernel(%arg0: i32, %arg1: memref<1x1x128xf32, #tpu.memory_space<vmem>>, %arg2: memref<1x1x128xf32, #tpu.memory_space<vmem>>, %arg3: memref<8x16x128xf32, #tpu.memory_space<vmem>>) attributes {dimension_semantics = [#tpu.dimension_semantics<parallel>], iteration_bounds = array<i64: 2>, scalar_prefetch = 0 : i64, scratch_operands = 0 : i64, tpu.core_type = #tpu.core_type<tc>, window_params = [{pipeline_mode = #tpu.pipeline_mode<synchronous>, transform_indices = @transform_0, window_bounds = array<i64: 1, 1, 128>}, {pipeline_mode = #tpu.pipeline_mode<synchronous>, transform_indices = @transform_1, window_bounds = array<i64: 1, 1, 128>}, {transform_indices = @transform_2, window_bounds = array<i64: 8, 16, 128>}]} {
    %c0 = arith.constant 0 : index
    %c0_0 = arith.constant 0 : index
    %c0_1 = arith.constant 0 : index
    %0 = vector.load %arg1[%c0, %c0_0, %c0_1] : memref<1x1x128xf32, #tpu.memory_space<vmem>>, vector<1x1x128xf32>
    %c0_2 = arith.constant 0 : index
    %c0_3 = arith.constant 0 : index
    %c0_4 = arith.constant 0 : index
    %1 = vector.load %arg2[%c0_2, %c0_3, %c0_4] : memref<1x1x128xf32, #tpu.memory_space<vmem>>, vector<1x1x128xf32>
    %2 = tpu.iota {dimensions = array<i32: 0>} : vector<8x1x128xi32>
    %c8_i32 = arith.constant 8 : i32
    %3 = arith.muli %arg0, %c8_i32 : i32
    %c1_i32 = arith.constant 1 : i32
    %4 = arith.addi %3, %c1_i32 : i32
    %5 = vector.broadcast %4 : i32 to vector<8x1x128xi32>
    %6 = arith.addi %2, %5 : vector<8x1x128xi32>
    %7 = arith.sitofp %6 : vector<8x1x128xi32> to vector<8x1x128xf32>
    %8 = tpu.iota {dimensions = array<i32: 1>} : vector<1x16x128xi32>
    %c1_i32_5 = arith.constant 1 : i32
    %9 = vector.broadcast %c1_i32_5 : i32 to vector<1x16x128xi32>
    %10 = arith.addi %8, %9 : vector<1x16x128xi32>
    %11 = arith.sitofp %10 : vector<1x16x128xi32> to vector<1x16x128xf32>
    %12 = vector.broadcast %0 : vector<1x1x128xf32> to vector<8x1x128xf32>
    %13 = arith.mulf %7, %12 : vector<8x1x128xf32>
    %14 = vector.broadcast %1 : vector<1x1x128xf32> to vector<8x1x128xf32>
    %15 = arith.addf %13, %14 : vector<8x1x128xf32>
    %16 = math.sin %15 : vector<8x1x128xf32>
    %17 = vector.broadcast %0 : vector<1x1x128xf32> to vector<1x16x128xf32>
    %18 = arith.mulf %11, %17 : vector<1x16x128xf32>
    %19 = vector.broadcast %1 : vector<1x1x128xf32> to vector<1x16x128xf32>
    %20 = arith.addf %18, %19 : vector<1x16x128xf32>
    %21 = math.sin %20 : vector<1x16x128xf32>
    %22 = tpu.iota {dimensions = array<i32: 2>} : vector<8x16x128xi32>
    %c64_i32 = arith.constant 64 : i32
    %23 = vector.broadcast %c64_i32 : i32 to vector<8x16x128xi32>
    %24 = arith.cmpi slt, %22, %23 : vector<8x16x128xi32>
    %25 = vector.shape_cast %16 : vector<8x1x128xf32> to vector<8x1x128xf32>
    %26 = vector.broadcast %25 : vector<8x1x128xf32> to vector<8x16x128xf32>
    %27 = vector.shape_cast %21 : vector<1x16x128xf32> to vector<1x16x128xf32>
    %28 = vector.broadcast %27 : vector<1x16x128xf32> to vector<8x16x128xf32>
    %29 = arith.select %24, %26, %28 : vector<8x16x128xi1>, vector<8x16x128xf32>
    %c0_6 = arith.constant 0 : index
    %c0_7 = arith.constant 0 : index
    %c0_8 = arith.constant 0 : index
    %30 = vector.load %arg3[%c0_6, %c0_7, %c0_8] : memref<8x16x128xf32, #tpu.memory_space<vmem>>, vector<8x16x128xf32>
    tpu.vector_store %arg3[%c0_6, %c0_7, %c0_8], %29 {strides = array<i32>} : memref<8x16x128xf32, #tpu.memory_space<vmem>>, vector<8x16x128xf32>,
    return
  }
  func.func @transform_0(%arg0: i32) -> (i32, i32, i32) {
    %c0_i32 = arith.constant 0 : i32
    %c0_i32_0 = arith.constant 0 : i32
    %c0_i32_1 = arith.constant 0 : i32
    %c0_i32_2 = arith.constant 0 : i32
    return %c0_i32, %c0_i32_0, %c0_i32_1 : i32, i32, i32
  }
  func.func @transform_1(%arg0: i32) -> (i32, i32, i32) {
    %c0_i32 = arith.constant 0 : i32
    %c0_i32_0 = arith.constant 0 : i32
    %c0_i32_1 = arith.constant 0 : i32
    %c0_i32_2 = arith.constant 0 : i32
    return %c0_i32, %c0_i32_0, %c0_i32_1 : i32, i32, i32
  }
  func.func @transform_2(%arg0: i32) -> (i32, i32, i32) {
    %c0_i32 = arith.constant 0 : i32
    %c0_i32_0 = arith.constant 0 : i32
    %c0_i32_1 = arith.constant 0 : i32
    return %arg0, %c0_i32, %c0_i32_0 : i32, i32, i32
  }
}

</mosaic_0001>

<llo_original>
// kernel: tpu_custom_call.1
$region0: #{tpu_custom_call.1}
  #allocation0 [shape = 'u32[]', space=smem, size = 0x4, offset = 0x4, fixed_abs, tag = 'smem constant byte address 0x4 - core index']
  #allocation1 [shape = 'u32[144,128]{1,0:T(1,128)}', space=vmem, size = 0x12000, scoped, tag = 'internal scratch']
  %s0 = inlined_call_operand.hbm [shape: f32[1,1,128], index: 0, kind: input, shape index: {}]
  %s1 = inlined_call_operand.vmem [shape: f32[1,1,128], index: 1, kind: input, shape index: {}]
  %s2 = inlined_call_operand.hbm [shape: f32[16,16,128], index: 2, kind: output, shape index: {}]
  %s3 = sld [smem:[#allocation0]]
  $region45: #{tpu_custom_call.1} parent=0
    _
  %s5 = ssub.s32 1, %s3
  %s6 = scalar_select 0, %s5, %s3
  $region1: #{tpu_custom_call.1} parent=0
    #allocation2 [shape = 'u8[512]{0}', space=vmem, size = 0x400, scoped, tag = 'input window, operand 0, single buffered']
    #allocation3 [shape = 's32[2]{0}', space=sflag, size = 0x8, scoped, tag = 'scoped memory for tpu_custom_call.1']
    #allocation4 [shape = 's32[2]{0}', space=sflag, size = 0x8, scoped, tag = 'scoped memory for tpu_custom_call.1']
    #allocation5 [shape = 'u8[131072]{0}', space=vmem, size = 0x20000, scoped, tag = 'output window, operand 0']
    %7 = vsyncpa [#allocation3], 0
    %8 = vsyncpa [#allocation4], 0
    %s9 = scalar_lea.sflag [#allocation4], 1
    %10 = vsyncpa %s9, 0
    loop: start=0, step=1, limit=4
    $region2: #{tpu_custom_call.1} parent=1 // loop_pre_header
      _
    $region3: #{tpu_custom_call.1} parent=1 // loop_header
      %s12 = sphi 0, %s16
      %p13 = scmp.ge.s32.totalorder %s12, 4
      %s20 = sphi 0, %s20
      %s22 = sphi 0, %s20
      %s23 = sphi 0, %s22
      %s37 = sphi 0, %s23
      %s41 = sphi 0, %s41
      %s43 = sphi 0, %s41
      %s44 = sphi 0, %s43
      %s58 = sphi 0, %s44
      %s64 = sphi 0, %s66
      %s67 = sphi 0, %s64
      %s68 = sphi 0, %s67
      %s84 = sphi 0, %s68
    $region4: #{tpu_custom_call.1} parent=1 // loop_header_branch
      %15 = sbr.rel (%p13) target = $region8
    $region5: #{tpu_custom_call.1} parent=1 // loop_body
      %s17 = ssub.s32 %s12, 1
      %s18 = ssub.s32 %s12, 2
      %s19 = sadd.s32 %s12, 1
      %s21 = sadd.s32 %s20, 1
      %p24 = scmp.eq.s32.totalorder %s12, 1
      %p25 = scmp.ne.s32.totalorder %s20, %s22
      %p26 = scmp.eq.s32.totalorder %s12, 0
      %p27 = por %p25, %p26
      %p28 = scmp.ne.s32.totalorder %s20, %s22
      %p29 = scmp.eq.s32.totalorder %s17, 1
      %p30 = por %p28, %p29
      %p31 = scmp.ne.s32.totalorder %s22, %s23
      %p32 = scmp.eq.s32.totalorder %s17, 0
      %p33 = por %p31, %p32
      %p34 = scmp.ne.s32.totalorder %s22, %s23
      %p35 = scmp.eq.s32.totalorder %s18, 1
      %p36 = por %p34, %p35
      %p38 = scmp.ne.s32.totalorder %s23, %s37
      %p39 = scmp.eq.s32.totalorder %s18, 0
      %p40 = por %p38, %p39
      %s42 = sadd.s32 %s41, 1
      %p45 = scmp.eq.s32.totalorder %s12, 1
      %p46 = scmp.ne.s32.totalorder %s41, %s43
      %p47 = scmp.eq.s32.totalorder %s12, 0
      %p48 = por %p46, %p47
      %p49 = scmp.ne.s32.totalorder %s41, %s43
      %p50 = scmp.eq.s32.totalorder %s17, 1
      %p51 = por %p49, %p50
      %p52 = scmp.ne.s32.totalorder %s43, %s44
      %p53 = scmp.eq.s32.totalorder %s17, 0
      %p54 = por %p52, %p53
      %p55 = scmp.ne.s32.totalorder %s43, %s44
      %p56 = scmp.eq.s32.totalorder %s18, 1
      %p57 = por %p55, %p56
      %p59 = scmp.ne.s32.totalorder %s44, %s58
      %p60 = scmp.eq.s32.totalorder %s18, 0
      %p61 = por %p59, %p60
      %s62 = ssub.s32 %s12, %s19
      %p63 = scmp.eq.s32.totalorder %s62, 0
      %s65 = sadd.s32 %s64, 1
      %s66 = scalar_select %p63, %s64, %s65
      %p69 = pneg %p63
      %p70 = scmp.eq.s32.totalorder %s12, 1
      %p71 = por %p69, %p70
      %p72 = scmp.ne.s32.totalorder %s64, %s67
      %p73 = scmp.eq.s32.totalorder %s12, 0
      %p74 = por %p72, %p73
      %p75 = scmp.ne.s32.totalorder %s64, %s67
      %p76 = scmp.eq.s32.totalorder %s17, 1
      %p77 = por %p75, %p76
      %p78 = scmp.ne.s32.totalorder %s67, %s68
      %p79 = scmp.eq.s32.totalorder %s17, 0
      %p80 = por %p78, %p79
      %p81 = scmp.ne.s32.totalorder %s67, %s68
      %p82 = scmp.eq.s32.totalorder %s18, 1
      %p83 = por %p81, %p82
      %p85 = scmp.ne.s32.totalorder %s68, %s84
      %p86 = scmp.eq.s32.totalorder %s18, 0
      %p87 = por %p85, %p86
      %p88 = scmp.le.s32.totalorder 1, %s12
      %p89 = scmp.lt.s32.totalorder %s12, 3
      %p90 = pnand %p88, %p89
      %p91 = pneg %p90
      // Predicated region
      $region9: #{tpu_custom_call.1} parent=5 // pred_check
        _
      $region10: #{tpu_custom_call.1} parent=5 // pred_check_branch
        %93 = sbr.rel (%p90) target = $region12
      $region11: #{tpu_custom_call.1} parent=5 // pred_region
        %s94 = ssub.s32 %s12, 1
        // Predicated region
        $region13: #{tpu_custom_call.1} parent=11 // pred_check
          %p95 = pneg %p33
        $region14: #{tpu_custom_call.1} parent=11 // pred_check_branch
          %97 = sbr.rel (%p95) target = $region16
        $region15: #{tpu_custom_call.1} parent=11 // pred_region
          %s99 = ssub.s32 16, 16
          %100 = vsyncadd [#allocation3], %s99
          %s102 = sshll.u32 [#allocation2], 4
          %s103 = int_to_ptr.vmem [resolvable:$true] %s102
          %105 = dma.hbm_to_vmem [thread:$0]  %s0, 16, %s103, [#allocation3]
        $region16: #{tpu_custom_call.1} parent=11 // pred_fallthru
          _
        // Predicated region
        $region17: #{tpu_custom_call.1} parent=11 // pred_check
          %p106 = pneg %p54
        $region18: #{tpu_custom_call.1} parent=11 // pred_check_branch
          %108 = sbr.rel (%p106) target = $region20
        $region19: #{tpu_custom_call.1} parent=11 // pred_region
          _
        $region20: #{tpu_custom_call.1} parent=11 // pred_fallthru
          _
      $region12: #{tpu_custom_call.1} parent=5 // pred_fallthru
        _
      %p109 = scmp.lt.s32.totalorder %s12, 2
      // Predicated region
      $region21: #{tpu_custom_call.1} parent=5 // pred_check
        %p110 = pneg %p109
      $region22: #{tpu_custom_call.1} parent=5 // pred_check_branch
        %112 = sbr.rel (%p110) target = $region24
      $region23: #{tpu_custom_call.1} parent=5 // pred_region
        _
      $region24: #{tpu_custom_call.1} parent=5 // pred_fallthru
        _
      %p113 = scmp.le.s32.totalorder 1, %s12
      %p114 = scmp.lt.s32.totalorder %s12, 3
      %p115 = pnand %p113, %p114
      %p116 = pneg %p115
      // Predicated region
      $region25: #{tpu_custom_call.1} parent=5 // pred_check
        _
      $region26: #{tpu_custom_call.1} parent=5 // pred_check_branch
        %118 = sbr.rel (%p115) target = $region28
      $region27: #{tpu_custom_call.1} parent=5 // pred_region
        %s119 = ssub.s32 %s12, 1
        // Predicated region
        $region29: #{tpu_custom_call.1} parent=27 // pred_check
          %p120 = pneg %p33
        $region30: #{tpu_custom_call.1} parent=27 // pred_check_branch
          %122 = sbr.rel (%p120) target = $region32
        $region31: #{tpu_custom_call.1} parent=27 // pred_region
          %123 = dma.done [#allocation3], 16
        $region32: #{tpu_custom_call.1} parent=27 // pred_fallthru
          _
        %p124 = pneg %p33
        %p125 = pneg %p30
        %p126 = pneg %p54
        %p127 = pneg %p51
        %p128 = pneg %p80
        %p129 = pneg %p77
        %s130 = sand.u32 %s67, 1
        %s131 = scalar_lea.sflag [#allocation4], %s130
        %s132 = sand.u32 %s67, 1
        %s133 = smul.addr %s132, 128
        %s134 = scalar_lea.vmem [#allocation5], %s133
        %s135 = smul.u32 8, %s17
        %v136 = vld [vmem:[#allocation2] sm:$0x1]
        %v137 = vld [vmem:[%s1] sm:$0x1]
        %s138 = smul.u32 %s17, 8
        %s139 = sadd.s32 %s138, 1
        %v140 = vstv %s139
        %v141 = vadd.s32 %v140, 1
        %v142 = vadd.s32 %v140, 2
        %v143 = vadd.s32 %v140, 3
        %v144 = vadd.s32 %v140, 4
        %v145 = vadd.s32 %v140, 5
        %v146 = vadd.s32 %v140, 6
        %v147 = vadd.s32 %v140, 7
        %v148 = vcvt.s32.f32 %v140
        %v149 = vcvt.s32.f32 %v141
        %v150 = vcvt.s32.f32 %v142
        %v151 = vcvt.s32.f32 %v143
        %v152 = vcvt.s32.f32 %v144
        %v153 = vcvt.s32.f32 %v145
        %v154 = vcvt.s32.f32 %v146
        %v155 = vcvt.s32.f32 %v147
        %v156 = vlaneseq
        %v157 = vshrl.u32 %v156, 7
        %v158 = vadd.s32 %v157, 8
        %v159 = vadd.s32 %v157, 1
        %v160 = vadd.s32 %v158, 1
        %v161 = vcvt.s32.f32 %v159
        %v162 = vcvt.s32.f32 %v160
        %v163 = vmul.f32 %v148, %v136
        %v164 = vmul.f32 %v149, %v136
        %v165 = vmul.f32 %v150, %v136
        %v166 = vmul.f32 %v151, %v136
        %v167 = vmul.f32 %v152, %v136
        %v168 = vmul.f32 %v153, %v136
        %v169 = vmul.f32 %v154, %v136
        %v170 = vmul.f32 %v155, %v136
        %v171 = vadd.f32 %v163, %v137
        %v172 = vadd.f32 %v164, %v137
        %v173 = vadd.f32 %v165, %v137
        %v174 = vadd.f32 %v166, %v137
        %v175 = vadd.f32 %v167, %v137
        %v176 = vadd.f32 %v168, %v137
        %v177 = vadd.f32 %v169, %v137
        %v178 = vadd.f32 %v170, %v137
        %v179 = vand.u32 2147483647, %v171
        %vm180 = vcmp.le.f32.partialorder %v179, 0.7853982
        %vm181 = vcmp.lt.s32.totalorder %v171, 0
        %v182 = vand.u32 %v171, 2139095040
        %v183 = vshrl.u32 %v182, 23
        %v184 = vsub.s32 %v183, 127
        %v185 = vand.u32 2147483647, %v171
        %v186 = vand.u32 %v185, 8388607
        %v187 = vor.u32 %v186, 8388608
        %v188 = vsub.s32 0, %v187
        %v189 = vadd.s32 %v184, 1
        %vm190 = vcmp.gt.s32.totalorder %v189, 0
        %v191 = vsel %vm190, %v189, 0
        %v192 = vshrl.u32 %v191, 5
        %v193 = vand.u32 %v191, 31
        %v194 = vsub.s32 32, %v193
        %v195 = vshrl.u32 683565275, %v194
        %v196 = vshll.u32 683565275, %v193
        %v197 = vshrl.u32 2475754826, %v194
        %v198 = vor.u32 %v196, %v197
        %v199 = vshll.u32 2475754826, %v193
        %v200 = vshrl.u32 2131351028, %v194
        %v201 = vor.u32 %v199, %v200
        %v202 = vshll.u32 2131351028, %v193
        %v203 = vshrl.u32 2102212464, %v194
        %v204 = vor.u32 %v202, %v203
        %v205 = vshll.u32 2102212464, %v193
        %v206 = vshrl.u32 920167782, %v194
        %v207 = vor.u32 %v205, %v206
        %v208 = vshll.u32 920167782, %v193
        %v209 = vshrl.u32 1326507024, %v194
        %v210 = vor.u32 %v208, %v209
        %vm211 = vcmp.lt.s32.totalorder %v192, 1
        %vm212 = vcmp.lt.s32.totalorder %v192, 2
        %vm213 = vcmp.lt.s32.totalorder %v192, 3
        %vm214 = vcmp.lt.s32.totalorder %v192, 4
        %v215 = vsel %vm211, %v195, %v198
        %v216 = vsel %vm214, %v204, 2102212464
        %v217 = vsel %vm213, %v201, %v216
        %v218 = vsel %vm212, %v215, %v217
        %v219 = vsel %vm211, %v198, %v201
        %v220 = vsel %vm214, %v207, 920167782
        %v221 = vsel %vm213, %v204, %v220
        %v222 = vsel %vm212, %v219, %v221
        %v223 = vsel %vm211, %v201, %v204
        %v224 = vsel %vm214, %v210, 1326507024
        %v225 = vsel %vm213, %v207, %v224
        %v226 = vsel %vm212, %v223, %v225
        %v227 = vshll.u32 %v187, 8
        %v228 = vmul.u32.u64.compose %v227, %v226
        %v229 = vextract.low.u32 %v228
        %v230 = vextract.high.u32 %v228
        %v231 = vmul.u32.u64.compose %v227, %v222
        %v232 = vextract.low.u32 %v231
        %v233 = vextract.high.u32 %v231
        %v234 = vmul.u32 %v227, %v218
        %v235 = vadd.s32 %v230, %v232
        %vm236 = vc.u32 %v230, %v232
        %v237 = vadd.s32 %v233, 1
        %v238 = vsel %vm236, %v237, %v233
        %v239 = vadd.s32 %v234, %v238
        %v240 = vadd.s32 %v239, 536870912
        %v241 = vshrl.u32 %v240, 30
        %v242 = vshll.u32 %v241, 30
        %v243 = vsub.s32 %v239, %v242
        %vm244 = vcmp.lt.s32.totalorder %v243, 0
        %v245 = vsub.s32 0, %v243
        %v246 = vsel %vm244, %v245, %v243
        %v247 = vclz %v246
        %v248 = vsub.s32 %v247, 2
        %vm249 = vcmp.gt.s32.totalorder 0, %v248
        %v250 = vsel %vm249, 0, %v248
        %v251 = vsub.s32 32, %v250
        %v252 = vshll.u32 %v243, %v250
        %v253 = vshrl.u32 %v235, %v251
        %v254 = vor.u32 %v252, %v253
        %v255 = vsub.s32 4294967266, %v250
        %v256 = vadd.s32 %v255, 127
        %v257 = vshll.u32 %v256, 23
        %v258 = vor.u32 4788187, %v257
        %v259 = vand.u32 2147483647, %v258
        %v261 = vcvt.s32.f32 %v254
        %v262 = vmul.f32 %v261, %v259
        %v263 = vxor.u32 %v262, 2147483648
        %v264 = vsel %vm181, %v263, %v262
        %v265 = vsub.s32 4, %v241
        %v266 = vsel %vm181, %v265, %v241
        %v267 = vsel %vm180, %v171, %v264
        %v268 = vsel %vm180, 0, %v266
        %v269 = vcosq.f32.pop %v267
        %v270 = vsinq.f32.pop %v267
        %vm271 = vweird.f32 %v171
        %v272 = vadd.s32 %v268, 3
        %v273 = vand.u32 %v272, 3
        %vm274 = vcmp.lt.s32.totalorder %v273, 2
        %vm275 = vcmp.eq.s32.totalorder %v273, 0
        %v276 = vxor.u32 %v270, 2147483648
        %v277 = vsel %vm275, %v269, %v276
        %vm278 = vcmp.eq.s32.totalorder %v273, 2
        %v279 = vxor.u32 %v269, 2147483648
        %v280 = vsel %vm278, %v279, %v270
        %v281 = vsel %vm274, %v277, %v280
        %v282 = vsel %vm271, nan, %v281
        %v283 = vand.u32 2147483647, %v172
        %vm284 = vcmp.le.f32.partialorder %v283, 0.7853982
        %vm285 = vcmp.lt.s32.totalorder %v172, 0
        %v286 = vand.u32 %v172, 2139095040
        %v287 = vshrl.u32 %v286, 23
        %v288 = vsub.s32 %v287, 127
        %v289 = vand.u32 2147483647, %v172
        %v290 = vand.u32 %v289, 8388607
        %v291 = vor.u32 %v290, 8388608
        %v292 = vsub.s32 0, %v291
        %v293 = vadd.s32 %v288, 1
        %vm294 = vcmp.gt.s32.totalorder %v293, 0
        %v295 = vsel %vm294, %v293, 0
        %v296 = vshrl.u32 %v295, 5
        %v297 = vand.u32 %v295, 31
        %v298 = vsub.s32 32, %v297
        %v299 = vshrl.u32 683565275, %v298
        %v300 = vshll.u32 683565275, %v297
        %v301 = vshrl.u32 2475754826, %v298
        %v302 = vor.u32 %v300, %v301
        %v303 = vshll.u32 2475754826, %v297
        %v304 = vshrl.u32 2131351028, %v298
        %v305 = vor.u32 %v303, %v304
        %v306 = vshll.u32 2131351028, %v297
        %v307 = vshrl.u32 2102212464, %v298
        %v308 = vor.u32 %v306, %v307
        %v309 = vshll.u32 2102212464, %v297
        %v310 = vshrl.u32 920167782, %v298
        %v311 = vor.u32 %v309, %v310
        %v312 = vshll.u32 920167782, %v297
        %v313 = vshrl.u32 1326507024, %v298
        %v314 = vor.u32 %v312, %v313
        %vm315 = vcmp.lt.s32.totalorder %v296, 1
        %vm316 = vcmp.lt.s32.totalorder %v296, 2
        %vm317 = vcmp.lt.s32.totalorder %v296, 3
        %vm318 = vcmp.lt.s32.totalorder %v296, 4
        %v319 = vsel %vm315, %v299, %v302
        %v320 = vsel %vm318, %v308, 2102212464
        %v321 = vsel %vm317, %v305, %v320
        %v322 = vsel %vm316, %v319, %v321
        %v323 = vsel %vm315, %v302, %v305
        %v324 = vsel %vm318, %v311, 920167782
        %v325 = vsel %vm317, %v308, %v324
        %v326 = vsel %vm316, %v323, %v325
        %v327 = vsel %vm315, %v305, %v308
        %v328 = vsel %vm318, %v314, 1326507024
        %v329 = vsel %vm317, %v311, %v328
        %v330 = vsel %vm316, %v327, %v329
        %v331 = vshll.u32 %v291, 8
        %v332 = vmul.u32.u64.compose %v331, %v330
        %v333 = vextract.low.u32 %v332
        %v334 = vextract.high.u32 %v332
        %v335 = vmul.u32.u64.compose %v331, %v326
        %v336 = vextract.low.u32 %v335
        %v337 = vextract.high.u32 %v335
        %v338 = vmul.u32 %v331, %v322
        %v339 = vadd.s32 %v334, %v336
        %vm340 = vc.u32 %v334, %v336
        %v341 = vadd.s32 %v337, 1
        %v342 = vsel %vm340, %v341, %v337
        %v343 = vadd.s32 %v338, %v342
        %v344 = vadd.s32 %v343, 536870912
        %v345 = vshrl.u32 %v344, 30
        %v346 = vshll.u32 %v345, 30
        %v347 = vsub.s32 %v343, %v346
        %vm348 = vcmp.lt.s32.totalorder %v347, 0
        %v349 = vsub.s32 0, %v347
        %v350 = vsel %vm348, %v349, %v347
        %v351 = vclz %v350
        %v352 = vsub.s32 %v351, 2
        %vm353 = vcmp.gt.s32.totalorder 0, %v352
        %v354 = vsel %vm353, 0, %v352
        %v355 = vsub.s32 32, %v354
        %v356 = vshll.u32 %v347, %v354
        %v357 = vshrl.u32 %v339, %v355
        %v358 = vor.u32 %v356, %v357
        %v359 = vsub.s32 4294967266, %v354
        %v360 = vadd.s32 %v359, 127
        %v361 = vshll.u32 %v360, 23
        %v362 = vor.u32 4788187, %v361
        %v363 = vand.u32 2147483647, %v362
        %v365 = vcvt.s32.f32 %v358
        %v366 = vmul.f32 %v365, %v363
        %v367 = vxor.u32 %v366, 2147483648
        %v368 = vsel %vm285, %v367, %v366
        %v369 = vsub.s32 4, %v345
        %v370 = vsel %vm285, %v369, %v345
        %v371 = vsel %vm284, %v172, %v368
        %v372 = vsel %vm284, 0, %v370
        %v373 = vcosq.f32.pop %v371
        %v374 = vsinq.f32.pop %v371
        %vm375 = vweird.f32 %v172
        %v376 = vadd.s32 %v372, 3
        %v377 = vand.u32 %v376, 3
        %vm378 = vcmp.lt.s32.totalorder %v377, 2
        %vm379 = vcmp.eq.s32.totalorder %v377, 0
        %v380 = vxor.u32 %v374, 2147483648
        %v381 = vsel %vm379, %v373, %v380
        %vm382 = vcmp.eq.s32.totalorder %v377, 2
        %v383 = vxor.u32 %v373, 2147483648
        %v384 = vsel %vm382, %v383, %v374
        %v385 = vsel %vm378, %v381, %v384
        %v386 = vsel %vm375, nan, %v385
        %v387 = vand.u32 2147483647, %v173
        %vm388 = vcmp.le.f32.partialorder %v387, 0.7853982
        %vm389 = vcmp.lt.s32.totalorder %v173, 0
        %v390 = vand.u32 %v173, 2139095040
        %v391 = vshrl.u32 %v390, 23
        %v392 = vsub.s32 %v391, 127
        %v393 = vand.u32 2147483647, %v173
        %v394 = vand.u32 %v393, 8388607
        %v395 = vor.u32 %v394, 8388608
        %v396 = vsub.s32 0, %v395
        %v397 = vadd.s32 %v392, 1
        %vm398 = vcmp.gt.s32.totalorder %v397, 0
        %v399 = vsel %vm398, %v397, 0
        %v400 = vshrl.u32 %v399, 5
        %v401 = vand.u32 %v399, 31
        %v402 = vsub.s32 32, %v401
        %v403 = vshrl.u32 683565275, %v402
        %v404 = vshll.u32 683565275, %v401
        %v405 = vshrl.u32 2475754826, %v402
        %v406 = vor.u32 %v404, %v405
        %v407 = vshll.u32 2475754826, %v401
        %v408 = vshrl.u32 2131351028, %v402
        %v409 = vor.u32 %v407, %v408
        %v410 = vshll.u32 2131351028, %v401
        %v411 = vshrl.u32 2102212464, %v402
        %v412 = vor.u32 %v410, %v411
        %v413 = vshll.u32 2102212464, %v401
        %v414 = vshrl.u32 920167782, %v402
        %v415 = vor.u32 %v413, %v414
        %v416 = vshll.u32 920167782, %v401
        %v417 = vshrl.u32 1326507024, %v402
        %v418 = vor.u32 %v416, %v417
        %vm419 = vcmp.lt.s32.totalorder %v400, 1
        %vm420 = vcmp.lt.s32.totalorder %v400, 2
        %vm421 = vcmp.lt.s32.totalorder %v400, 3
        %vm422 = vcmp.lt.s32.totalorder %v400, 4
        %v423 = vsel %vm419, %v403, %v406
        %v424 = vsel %vm422, %v412, 2102212464
        %v425 = vsel %vm421, %v409, %v424
        %v426 = vsel %vm420, %v423, %v425
        %v427 = vsel %vm419, %v406, %v409
        %v428 = vsel %vm422, %v415, 920167782
        %v429 = vsel %vm421, %v412, %v428
        %v430 = vsel %vm420, %v427, %v429
        %v431 = vsel %vm419, %v409, %v412
        %v432 = vsel %vm422, %v418, 1326507024
        %v433 = vsel %vm421, %v415, %v432
        %v434 = vsel %vm420, %v431, %v433
        %v435 = vshll.u32 %v395, 8
        %v436 = vmul.u32.u64.compose %v435, %v434
        %v437 = vextract.low.u32 %v436
        %v438 = vextract.high.u32 %v436
        %v439 = vmul.u32.u64.compose %v435, %v430
        %v440 = vextract.low.u32 %v439
        %v441 = vextract.high.u32 %v439
        %v442 = vmul.u32 %v435, %v426
        %v443 = vadd.s32 %v438, %v440
        %vm444 = vc.u32 %v438, %v440
        %v445 = vadd.s32 %v441, 1
        %v446 = vsel %vm444, %v445, %v441
        %v447 = vadd.s32 %v442, %v446
        %v448 = vadd.s32 %v447, 536870912
        %v449 = vshrl.u32 %v448, 30
        %v450 = vshll.u32 %v449, 30
        %v451 = vsub.s32 %v447, %v450
        %vm452 = vcmp.lt.s32.totalorder %v451, 0
        %v453 = vsub.s32 0, %v451
        %v454 = vsel %vm452, %v453, %v451
        %v455 = vclz %v454
        %v456 = vsub.s32 %v455, 2
        %vm457 = vcmp.gt.s32.totalorder 0, %v456
        %v458 = vsel %vm457, 0, %v456
        %v459 = vsub.s32 32, %v458
        %v460 = vshll.u32 %v451, %v458
        %v461 = vshrl.u32 %v443, %v459
        %v462 = vor.u32 %v460, %v461
        %v463 = vsub.s32 4294967266, %v458
        %v464 = vadd.s32 %v463, 127
        %v465 = vshll.u32 %v464, 23
        %v466 = vor.u32 4788187, %v465
        %v467 = vand.u32 2147483647, %v466
        %v469 = vcvt.s32.f32 %v462
        %v470 = vmul.f32 %v469, %v467
        %v471 = vxor.u32 %v470, 2147483648
        %v472 = vsel %vm389, %v471, %v470
        %v473 = vsub.s32 4, %v449
        %v474 = vsel %vm389, %v473, %v449
        %v475 = vsel %vm388, %v173, %v472
        %v476 = vsel %vm388, 0, %v474
        %v477 = vcosq.f32.pop %v475
        %v478 = vsinq.f32.pop %v475
        %vm479 = vweird.f32 %v173
        %v480 = vadd.s32 %v476, 3
        %v481 = vand.u32 %v480, 3
        %vm482 = vcmp.lt.s32.totalorder %v481, 2
        %vm483 = vcmp.eq.s32.totalorder %v481, 0
        %v484 = vxor.u32 %v478, 2147483648
        %v485 = vsel %vm483, %v477, %v484
        %vm486 = vcmp.eq.s32.totalorder %v481, 2
        %v487 = vxor.u32 %v477, 2147483648
        %v488 = vsel %vm486, %v487, %v478
        %v489 = vsel %vm482, %v485, %v488
        %v490 = vsel %vm479, nan, %v489
        %v491 = vand.u32 2147483647, %v174
        %vm492 = vcmp.le.f32.partialorder %v491, 0.7853982
        %vm493 = vcmp.lt.s32.totalorder %v174, 0
        %v494 = vand.u32 %v174, 2139095040
        %v495 = vshrl.u32 %v494, 23
        %v496 = vsub.s32 %v495, 127
        %v497 = vand.u32 2147483647, %v174
        %v498 = vand.u32 %v497, 8388607
        %v499 = vor.u32 %v498, 8388608
        %v500 = vsub.s32 0, %v499
        %v501 = vadd.s32 %v496, 1
        %vm502 = vcmp.gt.s32.totalorder %v501, 0
        %v503 = vsel %vm502, %v501, 0
        %v504 = vshrl.u32 %v503, 5
        %v505 = vand.u32 %v503, 31
        %v506 = vsub.s32 32, %v505
        %v507 = vshrl.u32 683565275, %v506
        %v508 = vshll.u32 683565275, %v505
        %v509 = vshrl.u32 2475754826, %v506
        %v510 = vor.u32 %v508, %v509
        %v511 = vshll.u32 2475754826, %v505
        %v512 = vshrl.u32 2131351028, %v506
        %v513 = vor.u32 %v511, %v512
        %v514 = vshll.u32 2131351028, %v505
        %v515 = vshrl.u32 2102212464, %v506
        %v516 = vor.u32 %v514, %v515
        %v517 = vshll.u32 2102212464, %v505
        %v518 = vshrl.u32 920167782, %v506
        %v519 = vor.u32 %v517, %v518
        %v520 = vshll.u32 920167782, %v505
        %v521 = vshrl.u32 1326507024, %v506
        %v522 = vor.u32 %v520, %v521
        %vm523 = vcmp.lt.s32.totalorder %v504, 1
        %vm524 = vcmp.lt.s32.totalorder %v504, 2
        %vm525 = vcmp.lt.s32.totalorder %v504, 3
        %vm526 = vcmp.lt.s32.totalorder %v504, 4
        %v527 = vsel %vm523, %v507, %v510
        %v528 = vsel %vm526, %v516, 2102212464
        %v529 = vsel %vm525, %v513, %v528
        %v530 = vsel %vm524, %v527, %v529
        %v531 = vsel %vm523, %v510, %v513
        %v532 = vsel %vm526, %v519, 920167782
        %v533 = vsel %vm525, %v516, %v532
        %v534 = vsel %vm524, %v531, %v533
        %v535 = vsel %vm523, %v513, %v516
        %v536 = vsel %vm526, %v522, 1326507024
        %v537 = vsel %vm525, %v519, %v536
        %v538 = vsel %vm524, %v535, %v537
        %v539 = vshll.u32 %v499, 8
        %v540 = vmul.u32.u64.compose %v539, %v538
        %v541 = vextract.low.u32 %v540
        %v542 = vextract.high.u32 %v540
        %v543 = vmul.u32.u64.compose %v539, %v534
        %v544 = vextract.low.u32 %v543
        %v545 = vextract.high.u32 %v543
        %v546 = vmul.u32 %v539, %v530
        %v547 = vadd.s32 %v542, %v544
        %vm548 = vc.u32 %v542, %v544
        %v549 = vadd.s32 %v545, 1
        %v550 = vsel %vm548, %v549, %v545
        %v551 = vadd.s32 %v546, %v550
        %v552 = vadd.s32 %v551, 536870912
        %v553 = vshrl.u32 %v552, 30
        %v554 = vshll.u32 %v553, 30
        %v555 = vsub.s32 %v551, %v554
        %vm556 = vcmp.lt.s32.totalorder %v555, 0
        %v557 = vsub.s32 0, %v555
        %v558 = vsel %vm556, %v557, %v555
        %v559 = vclz %v558
        %v560 = vsub.s32 %v559, 2
        %vm561 = vcmp.gt.s32.totalorder 0, %v560
        %v562 = vsel %vm561, 0, %v560
        %v563 = vsub.s32 32, %v562
        %v564 = vshll.u32 %v555, %v562
        %v565 = vshrl.u32 %v547, %v563
        %v566 = vor.u32 %v564, %v565
        %v567 = vsub.s32 4294967266, %v562
        %v568 = vadd.s32 %v567, 127
        %v569 = vshll.u32 %v568, 23
        %v570 = vor.u32 4788187, %v569
        %v571 = vand.u32 2147483647, %v570
        %v573 = vcvt.s32.f32 %v566
        %v574 = vmul.f32 %v573, %v571
        %v575 = vxor.u32 %v574, 2147483648
        %v576 = vsel %vm493, %v575, %v574
        %v577 = vsub.s32 4, %v553
        %v578 = vsel %vm493, %v577, %v553
        %v579 = vsel %vm492, %v174, %v576
        %v580 = vsel %vm492, 0, %v578
        %v581 = vcosq.f32.pop %v579
        %v582 = vsinq.f32.pop %v579
        %vm583 = vweird.f32 %v174
        %v584 = vadd.s32 %v580, 3
        %v585 = vand.u32 %v584, 3
        %vm586 = vcmp.lt.s32.totalorder %v585, 2
        %vm587 = vcmp.eq.s32.totalorder %v585, 0
        %v588 = vxor.u32 %v582, 2147483648
        %v589 = vsel %vm587, %v581, %v588
        %vm590 = vcmp.eq.s32.totalorder %v585, 2
        %v591 = vxor.u32 %v581, 2147483648
        %v592 = vsel %vm590, %v591, %v582
        %v593 = vsel %vm586, %v589, %v592
        %v594 = vsel %vm583, nan, %v593
        %v595 = vand.u32 2147483647, %v175
        %vm596 = vcmp.le.f32.partialorder %v595, 0.7853982
        %vm597 = vcmp.lt.s32.totalorder %v175, 0
        %v598 = vand.u32 %v175, 2139095040
        %v599 = vshrl.u32 %v598, 23
        %v600 = vsub.s32 %v599, 127
        %v601 = vand.u32 2147483647, %v175
        %v602 = vand.u32 %v601, 8388607
        %v603 = vor.u32 %v602, 8388608
        %v604 = vsub.s32 0, %v603
        %v605 = vadd.s32 %v600, 1
        %vm606 = vcmp.gt.s32.totalorder %v605, 0
        %v607 = vsel %vm606, %v605, 0
        %v608 = vshrl.u32 %v607, 5
        %v609 = vand.u32 %v607, 31
        %v610 = vsub.s32 32, %v609
        %v611 = vshrl.u32 683565275, %v610
        %v612 = vshll.u32 683565275, %v609
        %v613 = vshrl.u32 2475754826, %v610
        %v614 = vor.u32 %v612, %v613
        %v615 = vshll.u32 2475754826, %v609
        %v616 = vshrl.u32 2131351028, %v610
        %v617 = vor.u32 %v615, %v616
        %v618 = vshll.u32 2131351028, %v609
        %v619 = vshrl.u32 2102212464, %v610
        %v620 = vor.u32 %v618, %v619
        %v621 = vshll.u32 2102212464, %v609
        %v622 = vshrl.u32 920167782, %v610
        %v623 = vor.u32 %v621, %v622
        %v624 = vshll.u32 920167782, %v609
        %v625 = vshrl.u32 1326507024, %v610
        %v626 = vor.u32 %v624, %v625
        %vm627 = vcmp.lt.s32.totalorder %v608, 1
        %vm628 = vcmp.lt.s32.totalorder %v608, 2
        %vm629 = vcmp.lt.s32.totalorder %v608, 3
        %vm630 = vcmp.lt.s32.totalorder %v608, 4
        %v631 = vsel %vm627, %v611, %v614
        %v632 = vsel %vm630, %v620, 2102212464
        %v633 = vsel %vm629, %v617, %v632
        %v634 = vsel %vm628, %v631, %v633
        %v635 = vsel %vm627, %v614, %v617
        %v636 = vsel %vm630, %v623, 920167782
        %v637 = vsel %vm629, %v620, %v636
        %v638 = vsel %vm628, %v635, %v637
        %v639 = vsel %vm627, %v617, %v620
        %v640 = vsel %vm630, %v626, 1326507024
        %v641 = vsel %vm629, %v623, %v640
        %v642 = vsel %vm628, %v639, %v641
        %v643 = vshll.u32 %v603, 8
        %v644 = vmul.u32.u64.compose %v643, %v642
        %v645 = vextract.low.u32 %v644
        %v646 = vextract.high.u32 %v644
        %v647 = vmul.u32.u64.compose %v643, %v638
        %v648 = vextract.low.u32 %v647
        %v649 = vextract.high.u32 %v647
        %v650 = vmul.u32 %v643, %v634
        %v651 = vadd.s32 %v646, %v648
        %vm652 = vc.u32 %v646, %v648
        %v653 = vadd.s32 %v649, 1
        %v654 = vsel %vm652, %v653, %v649
        %v655 = vadd.s32 %v650, %v654
        %v656 = vadd.s32 %v655, 536870912
        %v657 = vshrl.u32 %v656, 30
        %v658 = vshll.u32 %v657, 30
        %v659 = vsub.s32 %v655, %v658
        %vm660 = vcmp.lt.s32.totalorder %v659, 0
        %v661 = vsub.s32 0, %v659
        %v662 = vsel %vm660, %v661, %v659
        %v663 = vclz %v662
        %v664 = vsub.s32 %v663, 2
        %vm665 = vcmp.gt.s32.totalorder 0, %v664
        %v666 = vsel %vm665, 0, %v664
        %v667 = vsub.s32 32, %v666
        %v668 = vshll.u32 %v659, %v666
        %v669 = vshrl.u32 %v651, %v667
        %v670 = vor.u32 %v668, %v669
        %v671 = vsub.s32 4294967266, %v666
        %v672 = vadd.s32 %v671, 127
        %v673 = vshll.u32 %v672, 23
        %v674 = vor.u32 4788187, %v673
        %v675 = vand.u32 2147483647, %v674
        %v677 = vcvt.s32.f32 %v670
        %v678 = vmul.f32 %v677, %v675
        %v679 = vxor.u32 %v678, 2147483648
        %v680 = vsel %vm597, %v679, %v678
        %v681 = vsub.s32 4, %v657
        %v682 = vsel %vm597, %v681, %v657
        %v683 = vsel %vm596, %v175, %v680
        %v684 = vsel %vm596, 0, %v682
        %v685 = vcosq.f32.pop %v683
        %v686 = vsinq.f32.pop %v683
        %vm687 = vweird.f32 %v175
        %v688 = vadd.s32 %v684, 3
        %v689 = vand.u32 %v688, 3
        %vm690 = vcmp.lt.s32.totalorder %v689, 2
        %vm691 = vcmp.eq.s32.totalorder %v689, 0
        %v692 = vxor.u32 %v686, 2147483648
        %v693 = vsel %vm691, %v685, %v692
        %vm694 = vcmp.eq.s32.totalorder %v689, 2
        %v695 = vxor.u32 %v685, 2147483648
        %v696 = vsel %vm694, %v695, %v686
        %v697 = vsel %vm690, %v693, %v696
        %v698 = vsel %vm687, nan, %v697
        %v699 = vand.u32 2147483647, %v176
        %vm700 = vcmp.le.f32.partialorder %v699, 0.7853982
        %vm701 = vcmp.lt.s32.totalorder %v176, 0
        %v702 = vand.u32 %v176, 2139095040
        %v703 = vshrl.u32 %v702, 23
        %v704 = vsub.s32 %v703, 127
        %v705 = vand.u32 2147483647, %v176
        %v706 = vand.u32 %v705, 8388607
        %v707 = vor.u32 %v706, 8388608
        %v708 = vsub.s32 0, %v707
        %v709 = vadd.s32 %v704, 1
        %vm710 = vcmp.gt.s32.totalorder %v709, 0
        %v711 = vsel %vm710, %v709, 0
        %v712 = vshrl.u32 %v711, 5
        %v713 = vand.u32 %v711, 31
        %v714 = vsub.s32 32, %v713
        %v715 = vshrl.u32 683565275, %v714
        %v716 = vshll.u32 683565275, %v713
        %v717 = vshrl.u32 2475754826, %v714
        %v718 = vor.u32 %v716, %v717
        %v719 = vshll.u32 2475754826, %v713
        %v720 = vshrl.u32 2131351028, %v714
        %v721 = vor.u32 %v719, %v720
        %v722 = vshll.u32 2131351028, %v713
        %v723 = vshrl.u32 2102212464, %v714
        %v724 = vor.u32 %v722, %v723
        %v725 = vshll.u32 2102212464, %v713
        %v726 = vshrl.u32 920167782, %v714
        %v727 = vor.u32 %v725, %v726
        %v728 = vshll.u32 920167782, %v713
        %v729 = vshrl.u32 1326507024, %v714
        %v730 = vor.u32 %v728, %v729
        %vm731 = vcmp.lt.s32.totalorder %v712, 1
        %vm732 = vcmp.lt.s32.totalorder %v712, 2
        %vm733 = vcmp.lt.s32.totalorder %v712, 3
        %vm734 = vcmp.lt.s32.totalorder %v712, 4
        %v735 = vsel %vm731, %v715, %v718
        %v736 = vsel %vm734, %v724, 2102212464
        %v737 = vsel %vm733, %v721, %v736
        %v738 = vsel %vm732, %v735, %v737
        %v739 = vsel %vm731, %v718, %v721
        %v740 = vsel %vm734, %v727, 920167782
        %v741 = vsel %vm733, %v724, %v740
        %v742 = vsel %vm732, %v739, %v741
        %v743 = vsel %vm731, %v721, %v724
        %v744 = vsel %vm734, %v730, 1326507024
        %v745 = vsel %vm733, %v727, %v744
        %v746 = vsel %vm732, %v743, %v745
        %v747 = vshll.u32 %v707, 8
        %v748 = vmul.u32.u64.compose %v747, %v746
        %v749 = vextract.low.u32 %v748
        %v750 = vextract.high.u32 %v748
        %v751 = vmul.u32.u64.compose %v747, %v742
        %v752 = vextract.low.u32 %v751
        %v753 = vextract.high.u32 %v751
        %v754 = vmul.u32 %v747, %v738
        %v755 = vadd.s32 %v750, %v752
        %vm756 = vc.u32 %v750, %v752
        %v757 = vadd.s32 %v753, 1
        %v758 = vsel %vm756, %v757, %v753
        %v759 = vadd.s32 %v754, %v758
        %v760 = vadd.s32 %v759, 536870912
        %v761 = vshrl.u32 %v760, 30
        %v762 = vshll.u32 %v761, 30
        %v763 = vsub.s32 %v759, %v762
        %vm764 = vcmp.lt.s32.totalorder %v763, 0
        %v765 = vsub.s32 0, %v763
        %v766 = vsel %vm764, %v765, %v763
        %v767 = vclz %v766
        %v768 = vsub.s32 %v767, 2
        %vm769 = vcmp.gt.s32.totalorder 0, %v768
        %v770 = vsel %vm769, 0, %v768
        %v771 = vsub.s32 32, %v770
        %v772 = vshll.u32 %v763, %v770
        %v773 = vshrl.u32 %v755, %v771
        %v774 = vor.u32 %v772, %v773
        %v775 = vsub.s32 4294967266, %v770
        %v776 = vadd.s32 %v775, 127
        %v777 = vshll.u32 %v776, 23
        %v778 = vor.u32 4788187, %v777
        %v779 = vand.u32 2147483647, %v778
        %v781 = vcvt.s32.f32 %v774
        %v782 = vmul.f32 %v781, %v779
        %v783 = vxor.u32 %v782, 2147483648
        %v784 = vsel %vm701, %v783, %v782
        %v785 = vsub.s32 4, %v761
        %v786 = vsel %vm701, %v785, %v761
        %v787 = vsel %vm700, %v176, %v784
        %v788 = vsel %vm700, 0, %v786
        %v789 = vcosq.f32.pop %v787
        %v790 = vsinq.f32.pop %v787
        %vm791 = vweird.f32 %v176
        %v792 = vadd.s32 %v788, 3
        %v793 = vand.u32 %v792, 3
        %vm794 = vcmp.lt.s32.totalorder %v793, 2
        %vm795 = vcmp.eq.s32.totalorder %v793, 0
        %v796 = vxor.u32 %v790, 2147483648
        %v797 = vsel %vm795, %v789, %v796
        %vm798 = vcmp.eq.s32.totalorder %v793, 2
        %v799 = vxor.u32 %v789, 2147483648
        %v800 = vsel %vm798, %v799, %v790
        %v801 = vsel %vm794, %v797, %v800
        %v802 = vsel %vm791, nan, %v801
        %v803 = vand.u32 2147483647, %v177
        %vm804 = vcmp.le.f32.partialorder %v803, 0.7853982
        %vm805 = vcmp.lt.s32.totalorder %v177, 0
        %v806 = vand.u32 %v177, 2139095040
        %v807 = vshrl.u32 %v806, 23
        %v808 = vsub.s32 %v807, 127
        %v809 = vand.u32 2147483647, %v177
        %v810 = vand.u32 %v809, 8388607
        %v811 = vor.u32 %v810, 8388608
        %v812 = vsub.s32 0, %v811
        %v813 = vadd.s32 %v808, 1
        %vm814 = vcmp.gt.s32.totalorder %v813, 0
        %v815 = vsel %vm814, %v813, 0
        %v816 = vshrl.u32 %v815, 5
        %v817 = vand.u32 %v815, 31
        %v818 = vsub.s32 32, %v817
        %v819 = vshrl.u32 683565275, %v818
        %v820 = vshll.u32 683565275, %v817
        %v821 = vshrl.u32 2475754826, %v818
        %v822 = vor.u32 %v820, %v821
        %v823 = vshll.u32 2475754826, %v817
        %v824 = vshrl.u32 2131351028, %v818
        %v825 = vor.u32 %v823, %v824
        %v826 = vshll.u32 2131351028, %v817
        %v827 = vshrl.u32 2102212464, %v818
        %v828 = vor.u32 %v826, %v827
        %v829 = vshll.u32 2102212464, %v817
        %v830 = vshrl.u32 920167782, %v818
        %v831 = vor.u32 %v829, %v830
        %v832 = vshll.u32 920167782, %v817
        %v833 = vshrl.u32 1326507024, %v818
        %v834 = vor.u32 %v832, %v833
        %vm835 = vcmp.lt.s32.totalorder %v816, 1
        %vm836 = vcmp.lt.s32.totalorder %v816, 2
        %vm837 = vcmp.lt.s32.totalorder %v816, 3
        %vm838 = vcmp.lt.s32.totalorder %v816, 4
        %v839 = vsel %vm835, %v819, %v822
        %v840 = vsel %vm838, %v828, 2102212464
        %v841 = vsel %vm837, %v825, %v840
        %v842 = vsel %vm836, %v839, %v841
        %v843 = vsel %vm835, %v822, %v825
        %v844 = vsel %vm838, %v831, 920167782
        %v845 = vsel %vm837, %v828, %v844
        %v846 = vsel %vm836, %v843, %v845
        %v847 = vsel %vm835, %v825, %v828
        %v848 = vsel %vm838, %v834, 1326507024
        %v849 = vsel %vm837, %v831, %v848
        %v850 = vsel %vm836, %v847, %v849
        %v851 = vshll.u32 %v811, 8
        %v852 = vmul.u32.u64.compose %v851, %v850
        %v853 = vextract.low.u32 %v852
        %v854 = vextract.high.u32 %v852
        %v855 = vmul.u32.u64.compose %v851, %v846
        %v856 = vextract.low.u32 %v855
        %v857 = vextract.high.u32 %v855
        %v858 = vmul.u32 %v851, %v842
        %v859 = vadd.s32 %v854, %v856
        %vm860 = vc.u32 %v854, %v856
        %v861 = vadd.s32 %v857, 1
        %v862 = vsel %vm860, %v861, %v857
        %v863 = vadd.s32 %v858, %v862
        %v864 = vadd.s32 %v863, 536870912
        %v865 = vshrl.u32 %v864, 30
        %v866 = vshll.u32 %v865, 30
        %v867 = vsub.s32 %v863, %v866
        %vm868 = vcmp.lt.s32.totalorder %v867, 0
        %v869 = vsub.s32 0, %v867
        %v870 = vsel %vm868, %v869, %v867
        %v871 = vclz %v870
        %v872 = vsub.s32 %v871, 2
        %vm873 = vcmp.gt.s32.totalorder 0, %v872
        %v874 = vsel %vm873, 0, %v872
        %v875 = vsub.s32 32, %v874
        %v876 = vshll.u32 %v867, %v874
        %v877 = vshrl.u32 %v859, %v875
        %v878 = vor.u32 %v876, %v877
        %v879 = vsub.s32 4294967266, %v874
        %v880 = vadd.s32 %v879, 127
        %v881 = vshll.u32 %v880, 23
        %v882 = vor.u32 4788187, %v881
        %v883 = vand.u32 2147483647, %v882
        %v885 = vcvt.s32.f32 %v878
        %v886 = vmul.f32 %v885, %v883
        %v887 = vxor.u32 %v886, 2147483648
        %v888 = vsel %vm805, %v887, %v886
        %v889 = vsub.s32 4, %v865
        %v890 = vsel %vm805, %v889, %v865
        %v891 = vsel %vm804, %v177, %v888
        %v892 = vsel %vm804, 0, %v890
        %v893 = vcosq.f32.pop %v891
        %v894 = vsinq.f32.pop %v891
        %vm895 = vweird.f32 %v177
        %v896 = vadd.s32 %v892, 3
        %v897 = vand.u32 %v896, 3
        %vm898 = vcmp.lt.s32.totalorder %v897, 2
        %vm899 = vcmp.eq.s32.totalorder %v897, 0
        %v900 = vxor.u32 %v894, 2147483648
        %v901 = vsel %vm899, %v893, %v900
        %vm902 = vcmp.eq.s32.totalorder %v897, 2
        %v903 = vxor.u32 %v893, 2147483648
        %v904 = vsel %vm902, %v903, %v894
        %v905 = vsel %vm898, %v901, %v904
        %v906 = vsel %vm895, nan, %v905
        %v907 = vand.u32 2147483647, %v178
        %vm908 = vcmp.le.f32.partialorder %v907, 0.7853982
        %vm909 = vcmp.lt.s32.totalorder %v178, 0
        %v910 = vand.u32 %v178, 2139095040
        %v911 = vshrl.u32 %v910, 23
        %v912 = vsub.s32 %v911, 127
        %v913 = vand.u32 2147483647, %v178
        %v914 = vand.u32 %v913, 8388607
        %v915 = vor.u32 %v914, 8388608
        %v916 = vsub.s32 0, %v915
        %v917 = vadd.s32 %v912, 1
        %vm918 = vcmp.gt.s32.totalorder %v917, 0
        %v919 = vsel %vm918, %v917, 0
        %v920 = vshrl.u32 %v919, 5
        %v921 = vand.u32 %v919, 31
        %v922 = vsub.s32 32, %v921
        %v923 = vshrl.u32 683565275, %v922
        %v924 = vshll.u32 683565275, %v921
        %v925 = vshrl.u32 2475754826, %v922
        %v926 = vor.u32 %v924, %v925
        %v927 = vshll.u32 2475754826, %v921
        %v928 = vshrl.u32 2131351028, %v922
        %v929 = vor.u32 %v927, %v928
        %v930 = vshll.u32 2131351028, %v921
        %v931 = vshrl.u32 2102212464, %v922
        %v932 = vor.u32 %v930, %v931
        %v933 = vshll.u32 2102212464, %v921
        %v934 = vshrl.u32 920167782, %v922
        %v935 = vor.u32 %v933, %v934
        %v936 = vshll.u32 920167782, %v921
        %v937 = vshrl.u32 1326507024, %v922
        %v938 = vor.u32 %v936, %v937
        %vm939 = vcmp.lt.s32.totalorder %v920, 1
        %vm940 = vcmp.lt.s32.totalorder %v920, 2
        %vm941 = vcmp.lt.s32.totalorder %v920, 3
        %vm942 = vcmp.lt.s32.totalorder %v920, 4
        %v943 = vsel %vm939, %v923, %v926
        %v944 = vsel %vm942, %v932, 2102212464
        %v945 = vsel %vm941, %v929, %v944
        %v946 = vsel %vm940, %v943, %v945
        %v947 = vsel %vm939, %v926, %v929
        %v948 = vsel %vm942, %v935, 920167782
        %v949 = vsel %vm941, %v932, %v948
        %v950 = vsel %vm940, %v947, %v949
        %v951 = vsel %vm939, %v929, %v932
        %v952 = vsel %vm942, %v938, 1326507024
        %v953 = vsel %vm941, %v935, %v952
        %v954 = vsel %vm940, %v951, %v953
        %v955 = vshll.u32 %v915, 8
        %v956 = vmul.u32.u64.compose %v955, %v954
        %v957 = vextract.low.u32 %v956
        %v958 = vextract.high.u32 %v956
        %v959 = vmul.u32.u64.compose %v955, %v950
        %v960 = vextract.low.u32 %v959
        %v961 = vextract.high.u32 %v959
        %v962 = vmul.u32 %v955, %v946
        %v963 = vadd.s32 %v958, %v960
        %vm964 = vc.u32 %v958, %v960
        %v965 = vadd.s32 %v961, 1
        %v966 = vsel %vm964, %v965, %v961
        %v967 = vadd.s32 %v962, %v966
        %v968 = vadd.s32 %v967, 536870912
        %v969 = vshrl.u32 %v968, 30
        %v970 = vshll.u32 %v969, 30
        %v971 = vsub.s32 %v967, %v970
        %vm972 = vcmp.lt.s32.totalorder %v971, 0
        %v973 = vsub.s32 0, %v971
        %v974 = vsel %vm972, %v973, %v971
        %v975 = vclz %v974
        %v976 = vsub.s32 %v975, 2
        %vm977 = vcmp.gt.s32.totalorder 0, %v976
        %v978 = vsel %vm977, 0, %v976
        %v979 = vsub.s32 32, %v978
        %v980 = vshll.u32 %v971, %v978
        %v981 = vshrl.u32 %v963, %v979
        %v982 = vor.u32 %v980, %v981
        %v983 = vsub.s32 4294967266, %v978
        %v984 = vadd.s32 %v983, 127
        %v985 = vshll.u32 %v984, 23
        %v986 = vor.u32 4788187, %v985
        %v987 = vand.u32 2147483647, %v986
        %v989 = vcvt.s32.f32 %v982
        %v990 = vmul.f32 %v989, %v987
        %v991 = vxor.u32 %v990, 2147483648
        %v992 = vsel %vm909, %v991, %v990
        %v993 = vsub.s32 4, %v969
        %v994 = vsel %vm909, %v993, %v969
        %v995 = vsel %vm908, %v178, %v992
        %v996 = vsel %vm908, 0, %v994
        %v997 = vcosq.f32.pop %v995
        %v998 = vsinq.f32.pop %v995
        %vm999 = vweird.f32 %v178
        %v1000 = vadd.s32 %v996, 3
        %v1001 = vand.u32 %v1000, 3
        %vm1002 = vcmp.lt.s32.totalorder %v1001, 2
        %vm1003 = vcmp.eq.s32.totalorder %v1001, 0
        %v1004 = vxor.u32 %v998, 2147483648
        %v1005 = vsel %vm1003, %v997, %v1004
        %vm1006 = vcmp.eq.s32.totalorder %v1001, 2
        %v1007 = vxor.u32 %v997, 2147483648
        %v1008 = vsel %vm1006, %v1007, %v998
        %v1009 = vsel %vm1002, %v1005, %v1008
        %v1010 = vsel %vm999, nan, %v1009
        %v1012 = vlaneseq
        %v1013 = vshrl.u32 %v1012, 7
        %v1014 = vsub.s32 0, %v1013
        %v1015 = vrot.slane %v136, %v1014
        %v1017 = vmul.f32 %v161, %v1015
        %v1018 = vmul.f32 %v162, %v1015
        %v1020 = vlaneseq
        %v1021 = vshrl.u32 %v1020, 7
        %v1022 = vsub.s32 0, %v1021
        %v1023 = vrot.slane %v137, %v1022
        %v1025 = vadd.f32 %v1017, %v1023
        %v1026 = vadd.f32 %v1018, %v1023
        %v1027 = vand.u32 2147483647, %v1025
        %vm1028 = vcmp.le.f32.partialorder %v1027, 0.7853982
        %vm1029 = vcmp.lt.s32.totalorder %v1025, 0
        %v1030 = vand.u32 %v1025, 2139095040
        %v1031 = vshrl.u32 %v1030, 23
        %v1032 = vsub.s32 %v1031, 127
        %v1033 = vand.u32 2147483647, %v1025
        %v1034 = vand.u32 %v1033, 8388607
        %v1035 = vor.u32 %v1034, 8388608
        %v1036 = vsub.s32 0, %v1035
        %v1037 = vadd.s32 %v1032, 1
        %vm1038 = vcmp.gt.s32.totalorder %v1037, 0
        %v1039 = vsel %vm1038, %v1037, 0
        %v1040 = vshrl.u32 %v1039, 5
        %v1041 = vand.u32 %v1039, 31
        %v1042 = vsub.s32 32, %v1041
        %v1043 = vshrl.u32 683565275, %v1042
        %v1044 = vshll.u32 683565275, %v1041
        %v1045 = vshrl.u32 2475754826, %v1042
        %v1046 = vor.u32 %v1044, %v1045
        %v1047 = vshll.u32 2475754826, %v1041
        %v1048 = vshrl.u32 2131351028, %v1042
        %v1049 = vor.u32 %v1047, %v1048
        %v1050 = vshll.u32 2131351028, %v1041
        %v1051 = vshrl.u32 2102212464, %v1042
        %v1052 = vor.u32 %v1050, %v1051
        %v1053 = vshll.u32 2102212464, %v1041
        %v1054 = vshrl.u32 920167782, %v1042
        %v1055 = vor.u32 %v1053, %v1054
        %v1056 = vshll.u32 920167782, %v1041
        %v1057 = vshrl.u32 1326507024, %v1042
        %v1058 = vor.u32 %v1056, %v1057
        %vm1059 = vcmp.lt.s32.totalorder %v1040, 1
        %vm1060 = vcmp.lt.s32.totalorder %v1040, 2
        %vm1061 = vcmp.lt.s32.totalorder %v1040, 3
        %vm1062 = vcmp.lt.s32.totalorder %v1040, 4
        %v1063 = vsel %vm1059, %v1043, %v1046
        %v1064 = vsel %vm1062, %v1052, 2102212464
        %v1065 = vsel %vm1061, %v1049, %v1064
        %v1066 = vsel %vm1060, %v1063, %v1065
        %v1067 = vsel %vm1059, %v1046, %v1049
        %v1068 = vsel %vm1062, %v1055, 920167782
        %v1069 = vsel %vm1061, %v1052, %v1068
        %v1070 = vsel %vm1060, %v1067, %v1069
        %v1071 = vsel %vm1059, %v1049, %v1052
        %v1072 = vsel %vm1062, %v1058, 1326507024
        %v1073 = vsel %vm1061, %v1055, %v1072
        %v1074 = vsel %vm1060, %v1071, %v1073
        %v1075 = vshll.u32 %v1035, 8
        %v1076 = vmul.u32.u64.compose %v1075, %v1074
        %v1077 = vextract.low.u32 %v1076
        %v1078 = vextract.high.u32 %v1076
        %v1079 = vmul.u32.u64.compose %v1075, %v1070
        %v1080 = vextract.low.u32 %v1079
        %v1081 = vextract.high.u32 %v1079
        %v1082 = vmul.u32 %v1075, %v1066
        %v1083 = vadd.s32 %v1078, %v1080
        %vm1084 = vc.u32 %v1078, %v1080
        %v1085 = vadd.s32 %v1081, 1
        %v1086 = vsel %vm1084, %v1085, %v1081
        %v1087 = vadd.s32 %v1082, %v1086
        %v1088 = vadd.s32 %v1087, 536870912
        %v1089 = vshrl.u32 %v1088, 30
        %v1090 = vshll.u32 %v1089, 30
        %v1091 = vsub.s32 %v1087, %v1090
        %vm1092 = vcmp.lt.s32.totalorder %v1091, 0
        %v1093 = vsub.s32 0, %v1091
        %v1094 = vsel %vm1092, %v1093, %v1091
        %v1095 = vclz %v1094
        %v1096 = vsub.s32 %v1095, 2
        %vm1097 = vcmp.gt.s32.totalorder 0, %v1096
        %v1098 = vsel %vm1097, 0, %v1096
        %v1099 = vsub.s32 32, %v1098
        %v1100 = vshll.u32 %v1091, %v1098
        %v1101 = vshrl.u32 %v1083, %v1099
        %v1102 = vor.u32 %v1100, %v1101
        %v1103 = vsub.s32 4294967266, %v1098
        %v1104 = vadd.s32 %v1103, 127
        %v1105 = vshll.u32 %v1104, 23
        %v1106 = vor.u32 4788187, %v1105
        %v1107 = vand.u32 2147483647, %v1106
        %v1109 = vcvt.s32.f32 %v1102
        %v1110 = vmul.f32 %v1109, %v1107
        %v1111 = vxor.u32 %v1110, 2147483648
        %v1112 = vsel %vm1029, %v1111, %v1110
        %v1113 = vsub.s32 4, %v1089
        %v1114 = vsel %vm1029, %v1113, %v1089
        %v1115 = vsel %vm1028, %v1025, %v1112
        %v1116 = vsel %vm1028, 0, %v1114
        %v1117 = vcosq.f32.pop %v1115
        %v1118 = vsinq.f32.pop %v1115
        %vm1119 = vweird.f32 %v1025
        %v1120 = vadd.s32 %v1116, 3
        %v1121 = vand.u32 %v1120, 3
        %vm1122 = vcmp.lt.s32.totalorder %v1121, 2
        %vm1123 = vcmp.eq.s32.totalorder %v1121, 0
        %v1124 = vxor.u32 %v1118, 2147483648
        %v1125 = vsel %vm1123, %v1117, %v1124
        %vm1126 = vcmp.eq.s32.totalorder %v1121, 2
        %v1127 = vxor.u32 %v1117, 2147483648
        %v1128 = vsel %vm1126, %v1127, %v1118
        %v1129 = vsel %vm1122, %v1125, %v1128
        %v1130 = vsel %vm1119, nan, %v1129
        %v1131 = vand.u32 2147483647, %v1026
        %vm1132 = vcmp.le.f32.partialorder %v1131, 0.7853982
        %vm1133 = vcmp.lt.s32.totalorder %v1026, 0
        %v1134 = vand.u32 %v1026, 2139095040
        %v1135 = vshrl.u32 %v1134, 23
        %v1136 = vsub.s32 %v1135, 127
        %v1137 = vand.u32 2147483647, %v1026
        %v1138 = vand.u32 %v1137, 8388607
        %v1139 = vor.u32 %v1138, 8388608
        %v1140 = vsub.s32 0, %v1139
        %v1141 = vadd.s32 %v1136, 1
        %vm1142 = vcmp.gt.s32.totalorder %v1141, 0
        %v1143 = vsel %vm1142, %v1141, 0
        %v1144 = vshrl.u32 %v1143, 5
        %v1145 = vand.u32 %v1143, 31
        %v1146 = vsub.s32 32, %v1145
        %v1147 = vshrl.u32 683565275, %v1146
        %v1148 = vshll.u32 683565275, %v1145
        %v1149 = vshrl.u32 2475754826, %v1146
        %v1150 = vor.u32 %v1148, %v1149
        %v1151 = vshll.u32 2475754826, %v1145
        %v1152 = vshrl.u32 2131351028, %v1146
        %v1153 = vor.u32 %v1151, %v1152
        %v1154 = vshll.u32 2131351028, %v1145
        %v1155 = vshrl.u32 2102212464, %v1146
        %v1156 = vor.u32 %v1154, %v1155
        %v1157 = vshll.u32 2102212464, %v1145
        %v1158 = vshrl.u32 920167782, %v1146
        %v1159 = vor.u32 %v1157, %v1158
        %v1160 = vshll.u32 920167782, %v1145
        %v1161 = vshrl.u32 1326507024, %v1146
        %v1162 = vor.u32 %v1160, %v1161
        %vm1163 = vcmp.lt.s32.totalorder %v1144, 1
        %vm1164 = vcmp.lt.s32.totalorder %v1144, 2
        %vm1165 = vcmp.lt.s32.totalorder %v1144, 3
        %vm1166 = vcmp.lt.s32.totalorder %v1144, 4
        %v1167 = vsel %vm1163, %v1147, %v1150
        %v1168 = vsel %vm1166, %v1156, 2102212464
        %v1169 = vsel %vm1165, %v1153, %v1168
        %v1170 = vsel %vm1164, %v1167, %v1169
        %v1171 = vsel %vm1163, %v1150, %v1153
        %v1172 = vsel %vm1166, %v1159, 920167782
        %v1173 = vsel %vm1165, %v1156, %v1172
        %v1174 = vsel %vm1164, %v1171, %v1173
        %v1175 = vsel %vm1163, %v1153, %v1156
        %v1176 = vsel %vm1166, %v1162, 1326507024
        %v1177 = vsel %vm1165, %v1159, %v1176
        %v1178 = vsel %vm1164, %v1175, %v1177
        %v1179 = vshll.u32 %v1139, 8
        %v1180 = vmul.u32.u64.compose %v1179, %v1178
        %v1181 = vextract.low.u32 %v1180
        %v1182 = vextract.high.u32 %v1180
        %v1183 = vmul.u32.u64.compose %v1179, %v1174
        %v1184 = vextract.low.u32 %v1183
        %v1185 = vextract.high.u32 %v1183
        %v1186 = vmul.u32 %v1179, %v1170
        %v1187 = vadd.s32 %v1182, %v1184
        %vm1188 = vc.u32 %v1182, %v1184
        %v1189 = vadd.s32 %v1185, 1
        %v1190 = vsel %vm1188, %v1189, %v1185
        %v1191 = vadd.s32 %v1186, %v1190
        %v1192 = vadd.s32 %v1191, 536870912
        %v1193 = vshrl.u32 %v1192, 30
        %v1194 = vshll.u32 %v1193, 30
        %v1195 = vsub.s32 %v1191, %v1194
        %vm1196 = vcmp.lt.s32.totalorder %v1195, 0
        %v1197 = vsub.s32 0, %v1195
        %v1198 = vsel %vm1196, %v1197, %v1195
        %v1199 = vclz %v1198
        %v1200 = vsub.s32 %v1199, 2
        %vm1201 = vcmp.gt.s32.totalorder 0, %v1200
        %v1202 = vsel %vm1201, 0, %v1200
        %v1203 = vsub.s32 32, %v1202
        %v1204 = vshll.u32 %v1195, %v1202
        %v1205 = vshrl.u32 %v1187, %v1203
        %v1206 = vor.u32 %v1204, %v1205
        %v1207 = vsub.s32 4294967266, %v1202
        %v1208 = vadd.s32 %v1207, 127
        %v1209 = vshll.u32 %v1208, 23
        %v1210 = vor.u32 4788187, %v1209
        %v1211 = vand.u32 2147483647, %v1210
        %v1213 = vcvt.s32.f32 %v1206
        %v1214 = vmul.f32 %v1213, %v1211
        %v1215 = vxor.u32 %v1214, 2147483648
        %v1216 = vsel %vm1133, %v1215, %v1214
        %v1217 = vsub.s32 4, %v1193
        %v1218 = vsel %vm1133, %v1217, %v1193
        %v1219 = vsel %vm1132, %v1026, %v1216
        %v1220 = vsel %vm1132, 0, %v1218
        %v1221 = vcosq.f32.pop %v1219
        %v1222 = vsinq.f32.pop %v1219
        %vm1223 = vweird.f32 %v1026
        %v1224 = vadd.s32 %v1220, 3
        %v1225 = vand.u32 %v1224, 3
        %vm1226 = vcmp.lt.s32.totalorder %v1225, 2
        %vm1227 = vcmp.eq.s32.totalorder %v1225, 0
        %v1228 = vxor.u32 %v1222, 2147483648
        %v1229 = vsel %vm1227, %v1221, %v1228
        %vm1230 = vcmp.eq.s32.totalorder %v1225, 2
        %v1231 = vxor.u32 %v1221, 2147483648
        %v1232 = vsel %vm1230, %v1231, %v1222
        %v1233 = vsel %vm1226, %v1229, %v1232
        %v1234 = vsel %vm1223, nan, %v1233
        %v1235 = vlaneseq
        %v1236 = vand.u32 %v1235, 127
        %vm1237 = vcmp.lt.s32.totalorder %v1236, 64
        %v1246 = vlaneseq
        %v1247 = vshrl.u32 %v1246, 7
        %v1248 = vsub.s32 0, %v1247
        %v1249 = vrot.slane %v282, %v1248
        %v1250 = vlaneseq
        %v1251 = vshrl.u32 %v1250, 7
        %v1252 = vsub.s32 0, %v1251
        %v1253 = vrot.slane %v386, %v1252
        %v1254 = vlaneseq
        %v1255 = vshrl.u32 %v1254, 7
        %v1256 = vsub.s32 0, %v1255
        %v1257 = vrot.slane %v490, %v1256
        %v1258 = vlaneseq
        %v1259 = vshrl.u32 %v1258, 7
        %v1260 = vsub.s32 0, %v1259
        %v1261 = vrot.slane %v594, %v1260
        %v1262 = vlaneseq
        %v1263 = vshrl.u32 %v1262, 7
        %v1264 = vsub.s32 0, %v1263
        %v1265 = vrot.slane %v698, %v1264
        %v1266 = vlaneseq
        %v1267 = vshrl.u32 %v1266, 7
        %v1268 = vsub.s32 0, %v1267
        %v1269 = vrot.slane %v802, %v1268
        %v1270 = vlaneseq
        %v1271 = vshrl.u32 %v1270, 7
        %v1272 = vsub.s32 0, %v1271
        %v1273 = vrot.slane %v906, %v1272
        %v1274 = vlaneseq
        %v1275 = vshrl.u32 %v1274, 7
        %v1276 = vsub.s32 0, %v1275
        %v1277 = vrot.slane %v1010, %v1276
        %v1286 = vsel %vm1237, %v1249, %v1130
        %v1287 = vsel %vm1237, %v1249, %v1234
        %v1288 = vsel %vm1237, %v1253, %v1130
        %v1289 = vsel %vm1237, %v1253, %v1234
        %v1290 = vsel %vm1237, %v1257, %v1130
        %v1291 = vsel %vm1237, %v1257, %v1234
        %v1292 = vsel %vm1237, %v1261, %v1130
        %v1293 = vsel %vm1237, %v1261, %v1234
        %v1294 = vsel %vm1237, %v1265, %v1130
        %v1295 = vsel %vm1237, %v1265, %v1234
        %v1296 = vsel %vm1237, %v1269, %v1130
        %v1297 = vsel %vm1237, %v1269, %v1234
        %v1298 = vsel %vm1237, %v1273, %v1130
        %v1299 = vsel %vm1237, %v1273, %v1234
        %v1300 = vsel %vm1237, %v1277, %v1130
        %v1301 = vsel %vm1237, %v1277, %v1234
        %1302 = vst [vmem:[%s134] sm:$0xff] %v1286
        %1303 = vst [vmem:[%s134 + $0x8] sm:$0xff] %v1287
        %1304 = vst [vmem:[%s134 + $0x10] sm:$0xff] %v1288
        %1305 = vst [vmem:[%s134 + $0x18] sm:$0xff] %v1289
        %1306 = vst [vmem:[%s134 + $0x20] sm:$0xff] %v1290
        %1307 = vst [vmem:[%s134 + $0x28] sm:$0xff] %v1291
        %1308 = vst [vmem:[%s134 + $0x30] sm:$0xff] %v1292
        %1309 = vst [vmem:[%s134 + $0x38] sm:$0xff] %v1293
        %1310 = vst [vmem:[%s134 + $0x40] sm:$0xff] %v1294
        %1311 = vst [vmem:[%s134 + $0x48] sm:$0xff] %v1295
        %1312 = vst [vmem:[%s134 + $0x50] sm:$0xff] %v1296
        %1313 = vst [vmem:[%s134 + $0x58] sm:$0xff] %v1297
        %1314 = vst [vmem:[%s134 + $0x60] sm:$0xff] %v1298
        %1315 = vst [vmem:[%s134 + $0x68] sm:$0xff] %v1299
        %1316 = vst [vmem:[%s134 + $0x70] sm:$0xff] %v1300
        %1317 = vst [vmem:[%s134 + $0x78] sm:$0xff] %v1301
        %s1318 = sand.u32 %s67, 1
        %s1319 = scalar_lea.sflag [#allocation4], %s1318
        %s1320 = sand.u32 %s67, 1
        %s1321 = smul.addr %s1320, 128
        %s1322 = scalar_lea.vmem [#allocation5], %s1321
        // Predicated region
        $region33: #{tpu_custom_call.1} parent=27 // pred_check
          %p1323 = pneg %p77
        $region34: #{tpu_custom_call.1} parent=27 // pred_check_branch
          %1325 = sbr.rel (%p1323) target = $region36
        $region35: #{tpu_custom_call.1} parent=27 // pred_region
          %s1326 = smul.u32 8, %s17
          %s1328 = ssub.s32 2048, 2048
          %1329 = vsyncadd %s1319, %s1328
          %s1330 = smul.addr %s1326, 2
          %s1331 = smul.addr %s1330, 128
          %s1332 = scalar_lea.hbm %s2, %s1331
          %s1333 = sshll.u32 %s1322, 4
          %s1334 = int_to_ptr.vmem [resolvable:$true] %s1333
          %1339 = dma.vmem_to_hbm [thread:$0]  %s1334, 2048, %s1332, %s1319, 128, 128, 8
        $region36: #{tpu_custom_call.1} parent=27 // pred_fallthru
          _
      $region28: #{tpu_custom_call.1} parent=5 // pred_fallthru
        _
      %p1340 = scmp.le.s32.totalorder 2, %s12
      // Predicated region
      $region37: #{tpu_custom_call.1} parent=5 // pred_check
        %p1341 = pneg %p1340
      $region38: #{tpu_custom_call.1} parent=5 // pred_check_branch
        %1343 = sbr.rel (%p1341) target = $region40
      $region39: #{tpu_custom_call.1} parent=5 // pred_region
        %s1344 = ssub.s32 %s12, 2
        // Predicated region
        $region41: #{tpu_custom_call.1} parent=39 // pred_check
          %p1345 = pneg %p83
        $region42: #{tpu_custom_call.1} parent=39 // pred_check_branch
          %1347 = sbr.rel (%p1345) target = $region44
        $region43: #{tpu_custom_call.1} parent=39 // pred_region
          %s1348 = sand.u32 %s68, 1
          %s1349 = scalar_lea.sflag [#allocation4], %s1348
          %s1350 = sand.u32 %s68, 1
          %s1351 = smul.addr %s1350, 128
          %s1352 = scalar_lea.vmem [#allocation5], %s1351
          %1353 = dma.done %s1349, 2048
        $region44: #{tpu_custom_call.1} parent=39 // pred_fallthru
          _
      $region40: #{tpu_custom_call.1} parent=5 // pred_fallthru
        _
    $region6: #{tpu_custom_call.1} parent=1 // loop_footer
      %s16 = sadd.s32 1, %s12
    $region7: #{tpu_custom_call.1} parent=1 // loop_footer_branch
      %11 = sbr.rel target = $region3
    $region8: #{tpu_custom_call.1} parent=1 // loop_exit
      _
    %1354 = vsyncpa [#allocation3], 1
    %s1355 = scalar_lea.sflag [#allocation3], 1
    %1356 = vsyncpa %s1355, 1
    %1357 = vsyncpa [#allocation4], 1
    %s1358 = scalar_lea.sflag [#allocation4], 1
    %1359 = vsyncpa %s1358, 1

</llo_original>
